<compile_context>
chip_gen: v7x
topology: tpu7x:2x2x1
jax: 0.10.0
libtpu: 0.0.40
codegen_flags: <defaults>
</compile_context>

<pallas_src>
import functools

import jax
import jax.numpy as jnp
from jax.experimental import pallas as pl
from jax.experimental.pallas import tpu as pltpu

LANES = 128
MAX_BLOCK_ROWS = 2048   # 2048 * 128 * 4 B = 1 MiB per input tile
NUM_SPLITS = 2          # leading parallel axis (uses both TCs on v7x)
SUBLANES = 8            # per-split output tile is (8, 128) to stay tile-aligned


def _sigmoid_weighted_sum_kernel(
    n_ref,          # SMEM (1,) int32 scalar-prefetch: true element count N
    x_ref,          # VMEM (block_rows, 128) tile of x
    loss_ref,       # VMEM (block_rows, 128) tile of loss_vector
    out_ref,        # VMEM (8, 128) per-split partial-sum tile
    acc_ref,        # VMEM (1, 128) lane accumulator (per core)
    *,
    block_rows,
    blocks_per_split,
):
    c = pl.program_id(0)   # split / core index (parallel)
    j = pl.program_id(1)   # reduction step within split (arbitrary)

    @pl.when(j == 0)
    def _init():
        acc_ref[...] = jnp.zeros_like(acc_ref)

    # Global element index of every lane of this tile; masks both the ragged
    # <128-element tail and any ragged / phantom (clamped) trailing block.
    # int32 is fine for N < 2^31 elements.
    gb = c * blocks_per_split + j                      # un-clamped global block
    base = gb * (block_rows * LANES)
    row = jax.lax.broadcasted_iota(jnp.int32, (block_rows, LANES), 0)
    col = jax.lax.broadcasted_iota(jnp.int32, (block_rows, LANES), 1)
    idx = base + row * LANES + col
    mask = idx < n_ref[0]

    x = x_ref[...].astype(jnp.float32)
    lv = loss_ref[...].astype(jnp.float32)
    contrib = jnp.where(mask, jax.nn.sigmoid(x) * lv, 0.0)

    # Lane-dense partial sums: reduce only across sublanes/vregs here; the
    # single cross-lane reduce + divide happens once, outside the hot loop.
    acc_ref[...] += jnp.sum(contrib, axis=0, keepdims=True)

    @pl.when(j == pl.num_programs(1) - 1)
    def _finalize():
        # Tile-aligned (8, 128) output: replicate the lane sums across sublanes.
        out_ref[...] = jnp.broadcast_to(acc_ref[...], (SUBLANES, LANES))


def sigmoid_weighted_mean(x, loss_vector):
    """(sigmoid(x) * loss_vector).mean() via a Pallas TPU reduction kernel."""
    assert x.shape == loss_vector.shape and x.ndim == 1
    n = x.shape[0]
    assert n > 0

    # Reshape to (rows, 128) so the last dim maps onto the 128-lane vreg axis.
    # Only a ragged tail (< 128 elems) is ever padded; the in-kernel mask makes
    # the padded values irrelevant.  For n % 128 == 0 there is no wrapper copy.
    n_pad = pl.cdiv(n, LANES) * LANES
    if n_pad != n:
        x = jnp.pad(x, (0, n_pad - n))
        loss_vector = jnp.pad(loss_vector, (0, n_pad - n))
    rows = n_pad // LANES
    x2d = x.reshape(rows, LANES)
    l2d = loss_vector.reshape(rows, LANES)

    # Block covers the whole array when it fits, else 2048-row (1 MiB) tiles.
    block_rows = rows if rows <= MAX_BLOCK_ROWS else MAX_BLOCK_ROWS
    num_blocks = pl.cdiv(rows, block_rows)
    bps = pl.cdiv(num_blocks, NUM_SPLITS)   # reduction steps per split

    def in_map(c, j, n_ref):
        # Clamp so phantom trailing blocks of the second split never DMA out of
        # bounds; their contribution is zeroed by the in-kernel index mask.
        return (jnp.minimum(c * bps + j, num_blocks - 1), 0)

    out = pl.pallas_call(
        functools.partial(
            _sigmoid_weighted_sum_kernel,
            block_rows=block_rows,
            blocks_per_split=bps,
        ),
        out_shape=jax.ShapeDtypeStruct((NUM_SPLITS * SUBLANES, LANES), jnp.float32),
        grid_spec=pltpu.PrefetchScalarGridSpec(
            num_scalar_prefetch=1,
            grid=(NUM_SPLITS, bps),
            in_specs=[
                pl.BlockSpec((block_rows, LANES), in_map),
                pl.BlockSpec((block_rows, LANES), in_map),
            ],
            out_specs=pl.BlockSpec((SUBLANES, LANES), lambda c, j, n_ref: (c, 0)),
            scratch_shapes=[pltpu.VMEM((1, LANES), jnp.float32)],
        ),
        compiler_params=pltpu.CompilerParams(
            dimension_semantics=("parallel", "arbitrary"),
        ),
    )(jnp.array([n], jnp.int32), x2d, l2d)

    # Each split's (8,128) tile holds its lane partial sums replicated across
    # sublanes; take one sublane per split, then do the single cross-lane
    # reduce and the divide-by-N here.
    partials = out.reshape(NUM_SPLITS, SUBLANES, LANES)[:, 0, :]
    return jnp.sum(partials) / n


class SigmoidX:
    """JAX/Pallas equivalent of the PyTorch `sigmoid_x` module."""

    def __init__(self, num_train: int):
        # torch.zeros(tr.data.shape[0]) -> deterministic zero init.
        self.x = jnp.zeros((num_train,), jnp.float32)

    def __call__(self, loss_vector):
        return sigmoid_weighted_mean(self.x, loss_vector)


if __name__ == "__main__":
    key = jax.random.PRNGKey(0)
    k1, k2, k3 = jax.random.split(key, 3)

    # Case 1: module as specified (x = zeros), N not a multiple of 128 so the
    # ragged-tail masking path is exercised.
    N = 1000
    loss_vector = jax.random.uniform(k1, (N,), dtype=jnp.float32)
    model = SigmoidX(N)
    out = jax.block_until_ready(model(loss_vector))
    ref = jnp.mean(jax.nn.sigmoid(model.x) * loss_vector)
    assert out.shape == ()
    assert jnp.allclose(out, ref, rtol=1e-5, atol=1e-6), (out, ref)

    # Case 2: non-trivial x, N a multiple of 128 (zero-copy wrapper path).
    N2 = 1024
    x_rand = jax.random.normal(k2, (N2,), dtype=jnp.float32)
    lv_rand = jax.random.uniform(k3, (N2,), dtype=jnp.float32)
    out2 = jax.block_until_ready(sigmoid_weighted_mean(x_rand, lv_rand))
    ref2 = jnp.mean(jax.nn.sigmoid(x_rand) * lv_rand)
    assert jnp.allclose(out2, ref2, rtol=1e-5, atol=1e-6), (out2, ref2)

    print("KERNEL_OK")
</pallas_src>

<mosaic_0001>
module attributes {stable_mosaic.version = 11 : i64} {
  func.func @_sigmoid_weighted_sum_kernel(%arg0: i32, %arg1: i32, %arg2: memref<1xi32, #tpu.memory_space<smem>>, %arg3: memref<8x128xf32, #tpu.memory_space<vmem>>, %arg4: memref<8x128xf32, #tpu.memory_space<vmem>>, %arg5: memref<8x128xf32, #tpu.memory_space<vmem>>, %arg6: memref<1x128xf32, #tpu.memory_space<vmem>>) attributes {dimension_semantics = [#tpu.dimension_semantics<parallel>, #tpu.dimension_semantics<arbitrary>], iteration_bounds = array<i64: 2, 1>, scalar_prefetch = 1 : i64, scratch_operands = 1 : i64, tpu.core_type = #tpu.core_type<tc>, window_params = [{transform_indices = @transform_0, window_bounds = array<i64: 8, 128>}, {transform_indices = @transform_1, window_bounds = array<i64: 8, 128>}, {transform_indices = @transform_2, window_bounds = array<i64: 8, 128>}]} {
    %c0_i32 = arith.constant 0 : i32
    %0 = arith.cmpi eq, %arg1, %c0_i32 : i32
    %1 = arith.extui %0 : i1 to i32
    %c0_i32_0 = arith.constant 0 : i32
    %2 = arith.cmpi ne, %1, %c0_i32_0 : i32
    scf.if %2 {
      %cst_13 = arith.constant 0.000000e+00 : f32
      %34 = vector.broadcast %cst_13 : f32 to vector<1x128xf32>
      %c0_14 = arith.constant 0 : index
      %c0_15 = arith.constant 0 : index
      %35 = vector.load %arg6[%c0_14, %c0_15] : memref<1x128xf32, #tpu.memory_space<vmem>>, vector<1x128xf32>
      tpu.vector_store %arg6[%c0_14, %c0_15], %34 {strides = array<i32>} : memref<1x128xf32, #tpu.memory_space<vmem>>, vector<1x128xf32>,
    } else {
    }
    %c1_i32 = arith.constant 1 : i32
    %3 = arith.muli %arg0, %c1_i32 : i32
    %4 = arith.addi %3, %arg1 : i32
    %c1024_i32 = arith.constant 1024 : i32
    %5 = arith.muli %4, %c1024_i32 : i32
    %6 = tpu.iota {dimensions = array<i32: 0>} : vector<8x128xi32>
    %7 = tpu.iota {dimensions = array<i32: 1>} : vector<8x128xi32>
    %c128_i32 = arith.constant 128 : i32
    %8 = vector.broadcast %c128_i32 : i32 to vector<8x128xi32>
    %9 = arith.muli %6, %8 : vector<8x128xi32>
    %10 = vector.broadcast %5 : i32 to vector<8x128xi32>
    %11 = arith.addi %10, %9 : vector<8x128xi32>
    %12 = arith.addi %11, %7 : vector<8x128xi32>
    %c0 = arith.constant 0 : index
    %13 = memref.load %arg2[%c0] : memref<1xi32, #tpu.memory_space<smem>>
    %14 = vector.broadcast %13 : i32 to vector<8x128xi32>
    %15 = arith.cmpi slt, %12, %14 : vector<8x128xi32>
    %c0_1 = arith.constant 0 : index
    %c0_2 = arith.constant 0 : index
    %16 = vector.load %arg3[%c0_1, %c0_2] : memref<8x128xf32, #tpu.memory_space<vmem>>, vector<8x128xf32>
    %c0_3 = arith.constant 0 : index
    %c0_4 = arith.constant 0 : index
    %17 = vector.load %arg4[%c0_3, %c0_4] : memref<8x128xf32, #tpu.memory_space<vmem>>, vector<8x128xf32>
    %18 = arith.negf %16 : vector<8x128xf32>
    %19 = math.exp %18 : vector<8x128xf32>
    %cst = arith.constant 1.000000e+00 : f32
    %20 = vector.broadcast %cst : f32 to vector<8x128xf32>
    %21 = arith.addf %20, %19 : vector<8x128xf32>
    %22 = arith.divf %20, %21 : vector<8x128xf32>
    %23 = arith.mulf %22, %17 : vector<8x128xf32>
    %cst_5 = arith.constant 0.000000e+00 : f32
    %24 = vector.broadcast %cst_5 : f32 to vector<8x128xf32>
    %25 = arith.select %15, %23, %24 : vector<8x128xi1>, vector<8x128xf32>
    %c0_6 = arith.constant 0 : index
    %c0_7 = arith.constant 0 : index
    %26 = vector.load %arg6[%c0_6, %c0_7] : memref<1x128xf32, #tpu.memory_space<vmem>>, vector<1x128xf32>
    %cst_8 = arith.constant dense<0.000000e+00> : vector<128xf32>
    %27 = vector.multi_reduction <add>, %25, %cst_8 [0] : vector<8x128xf32> to vector<128xf32>
    %28 = vector.shape_cast %27 : vector<128xf32> to vector<1x128xf32>
    %29 = arith.addf %26, %28 : vector<1x128xf32>
    %c0_9 = arith.constant 0 : index
    %c0_10 = arith.constant 0 : index
    %30 = vector.load %arg6[%c0_9, %c0_10] : memref<1x128xf32, #tpu.memory_space<vmem>>, vector<1x128xf32>
    tpu.vector_store %arg6[%c0_9, %c0_10], %29 {strides = array<i32>} : memref<1x128xf32, #tpu.memory_space<vmem>>, vector<1x128xf32>,
    %c0_i32_11 = arith.constant 0 : i32
    %31 = arith.cmpi eq, %arg1, %c0_i32_11 : i32
    %32 = arith.extui %31 : i1 to i32
    %c0_i32_12 = arith.constant 0 : i32
    %33 = arith.cmpi ne, %32, %c0_i32_12 : i32
    scf.if %33 {
      %c0_13 = arith.constant 0 : index
      %c0_14 = arith.constant 0 : index
      %34 = vector.load %arg6[%c0_13, %c0_14] : memref<1x128xf32, #tpu.memory_space<vmem>>, vector<1x128xf32>
      %35 = vector.shape_cast %34 : vector<1x128xf32> to vector<1x128xf32>
      %36 = vector.broadcast %35 : vector<1x128xf32> to vector<8x128xf32>
      %c0_15 = arith.constant 0 : index
      %c0_16 = arith.constant 0 : index
      %37 = vector.load %arg5[%c0_15, %c0_16] : memref<8x128xf32, #tpu.memory_space<vmem>>, vector<8x128xf32>
      tpu.vector_store %arg5[%c0_15, %c0_16], %36 {strides = array<i32>} : memref<8x128xf32, #tpu.memory_space<vmem>>, vector<8x128xf32>,
    } else {
    }
    return
  }
  func.func @transform_0(%arg0: i32, %arg1: i32, %arg2: memref<1xi32, #tpu.memory_space<smem>>) -> (i32, i32) {
    %c1_i32 = arith.constant 1 : i32
    %0 = arith.muli %arg0, %c1_i32 : i32
    %1 = arith.addi %0, %arg1 : i32
    %c0_i32 = arith.constant 0 : i32
    %2 = arith.minsi %1, %c0_i32 : i32
    %c0_i32_0 = arith.constant 0 : i32
    %c0_i32_1 = arith.constant 0 : i32
    return %2, %c0_i32_0 : i32, i32
  }
  func.func @transform_1(%arg0: i32, %arg1: i32, %arg2: memref<1xi32, #tpu.memory_space<smem>>) -> (i32, i32) {
    %c1_i32 = arith.constant 1 : i32
    %0 = arith.muli %arg0, %c1_i32 : i32
    %1 = arith.addi %0, %arg1 : i32
    %c0_i32 = arith.constant 0 : i32
    %2 = arith.minsi %1, %c0_i32 : i32
    %c0_i32_0 = arith.constant 0 : i32
    %c0_i32_1 = arith.constant 0 : i32
    return %2, %c0_i32_0 : i32, i32
  }
  func.func @transform_2(%arg0: i32, %arg1: i32, %arg2: memref<1xi32, #tpu.memory_space<smem>>) -> (i32, i32) {
    %c0_i32 = arith.constant 0 : i32
    %c0_i32_0 = arith.constant 0 : i32
    return %arg0, %c0_i32 : i32, i32
  }
}

</mosaic_0001>

<llo_original>
// kernel: tpu_custom_call.1
$region0: #{tpu_custom_call.1}
  #allocation0 [shape = 'u32[]', space=smem, size = 0x4, offset = 0x4, fixed_abs, tag = 'smem constant byte address 0x4 - core index']
  #allocation1 [shape = 'u32[144,128]{1,0:T(1,128)}', space=vmem, size = 0x12000, scoped, tag = 'internal scratch']
  #allocation2 [shape = 'f32[1,128]{1,0:T(1,128)}', space=vmem, size = 0x200, scoped, tag = 'scratch operand']
  #allocation3 [shape = 's32[1]{0}', space=sflag, size = 0x4, scoped, tag = 'scoped memory for tpu_custom_call.1']
  #allocation4 [shape = 's32[1]{0:T(128)S(6)}', space=smem, size = 0x200, scoped, tag = 'prefetched SMEM operand 0']
  %s0 = inlined_call_operand.<no memory space> [shape: s32[1], index: 0, kind: input, shape index: {}]
  %s1 = inlined_call_operand.hbm [shape: f32[8,128], index: 1, kind: input, shape index: {}]
  %s2 = inlined_call_operand.hbm [shape: f32[8,128], index: 2, kind: input, shape index: {}]
  %s3 = inlined_call_operand.hbm [shape: f32[16,128], index: 3, kind: output, shape index: {}]
  %s4 = sld [smem:[#allocation0]]
  $region57: #{tpu_custom_call.1} parent=0
    _
  %s6 = ssub.s32 1, %s4
  %s7 = scalar_select 0, %s6, %s4
  %8 = sst [smem:[#allocation4]] %s0
  $region1: #{tpu_custom_call.1} parent=0
    #allocation5 [shape = 'u8[8192]{0}', space=vmem, size = 0x2000, scoped, tag = 'input window, operand 1']
    #allocation6 [shape = 's32[2]{0}', space=sflag, size = 0x8, scoped, tag = 'scoped memory for tpu_custom_call.1']
    #allocation7 [shape = 's32[2]{0}', space=sflag, size = 0x8, scoped, tag = 'scoped memory for tpu_custom_call.1']
    #allocation8 [shape = 'u8[8192]{0}', space=vmem, size = 0x2000, scoped, tag = 'input window, operand 2']
    #allocation9 [shape = 's32[2]{0}', space=sflag, size = 0x8, scoped, tag = 'scoped memory for tpu_custom_call.1']
    #allocation10 [shape = 'u8[8192]{0}', space=vmem, size = 0x2000, scoped, tag = 'output window, operand 0']
    %9 = vsyncpa [#allocation6], 0
    %s10 = scalar_lea.sflag [#allocation6], 1
    %11 = vsyncpa %s10, 0
    %12 = vsyncpa [#allocation9], 0
    %s13 = scalar_lea.sflag [#allocation9], 1
    %14 = vsyncpa %s13, 0
    %15 = vsyncpa [#allocation7], 0
    %s16 = scalar_lea.sflag [#allocation7], 1
    %17 = vsyncpa %s16, 0
    loop: start=0, step=1, limit=4
    $region2: #{tpu_custom_call.1} parent=1 // loop_pre_header
      _
    $region3: #{tpu_custom_call.1} parent=1 // loop_header
      %s19 = sphi 0, %s23
      %p20 = scmp.ge.s32.totalorder %s19, 4
      %s26 = sphi 0, %s38
      %s27 = sphi 0, %s34
      %s28 = sphi 0, %s26
      %s29 = sphi 0, %s27
      %s30 = sphi 0, %s28
      %s31 = sphi 0, %s29
      %s47 = sphi 0, %s49
      %s50 = sphi 0, %s47
      %s51 = sphi 0, %s50
      %s67 = sphi 0, %s51
      %s79 = sphi 0, %s81
      %s82 = sphi 0, %s79
      %s83 = sphi 0, %s82
      %s99 = sphi 0, %s83
      %s105 = sphi 0, %s107
      %s108 = sphi 0, %s105
      %s109 = sphi 0, %s108
      %s125 = sphi 0, %s109
    $region4: #{tpu_custom_call.1} parent=1 // loop_header_branch
      %22 = sbr.rel (%p20) target = $region8
    $region5: #{tpu_custom_call.1} parent=1 // loop_body
      %s24 = ssub.s32 %s19, 1
      %s25 = ssub.s32 %s19, 2
      %s32 = sadd.s32 1, %s27
      %p33 = scmp.ge.s32.totalorder %s32, 1
      %s34 = scalar_select %p33, 0, %s32
      %s35 = sadd.s32 1, %s26
      %s36 = scalar_select %p33, %s35, %s26
      %p37 = scmp.ge.s32.totalorder %s36, 2
      %s38 = scalar_select %p37, 0, %s36
      %s39 = sadd.s32 %s26, %s27
      %p40 = scmp.lt.s32.totalorder %s39, 0
      %s41 = scalar_select %p40, %s39, 0
      %s42 = sadd.s32 %s38, %s34
      %p43 = scmp.lt.s32.totalorder %s42, 0
      %s44 = scalar_select %p43, %s42, 0
      %s45 = ssub.s32 %s41, %s44
      %p46 = scmp.eq.s32.totalorder %s45, 0
      %s48 = sadd.s32 %s47, 1
      %s49 = scalar_select %p46, %s47, %s48
      %p52 = pneg %p46
      %p53 = scmp.eq.s32.totalorder %s19, 1
      %p54 = por %p52, %p53
      %p55 = scmp.ne.s32.totalorder %s47, %s50
      %p56 = scmp.eq.s32.totalorder %s19, 0
      %p57 = por %p55, %p56
      %p58 = scmp.ne.s32.totalorder %s47, %s50
      %p59 = scmp.eq.s32.totalorder %s24, 1
      %p60 = por %p58, %p59
      %p61 = scmp.ne.s32.totalorder %s50, %s51
      %p62 = scmp.eq.s32.totalorder %s24, 0
      %p63 = por %p61, %p62
      %p64 = scmp.ne.s32.totalorder %s50, %s51
      %p65 = scmp.eq.s32.totalorder %s25, 1
      %p66 = por %p64, %p65
      %p68 = scmp.ne.s32.totalorder %s51, %s67
      %p69 = scmp.eq.s32.totalorder %s25, 0
      %p70 = por %p68, %p69
      %s71 = sadd.s32 %s26, %s27
      %p72 = scmp.lt.s32.totalorder %s71, 0
      %s73 = scalar_select %p72, %s71, 0
      %s74 = sadd.s32 %s38, %s34
      %p75 = scmp.lt.s32.totalorder %s74, 0
      %s76 = scalar_select %p75, %s74, 0
      %s77 = ssub.s32 %s73, %s76
      %p78 = scmp.eq.s32.totalorder %s77, 0
      %s80 = sadd.s32 %s79, 1
      %s81 = scalar_select %p78, %s79, %s80
      %p84 = pneg %p78
      %p85 = scmp.eq.s32.totalorder %s19, 1
      %p86 = por %p84, %p85
      %p87 = scmp.ne.s32.totalorder %s79, %s82
      %p88 = scmp.eq.s32.totalorder %s19, 0
      %p89 = por %p87, %p88
      %p90 = scmp.ne.s32.totalorder %s79, %s82
      %p91 = scmp.eq.s32.totalorder %s24, 1
      %p92 = por %p90, %p91
      %p93 = scmp.ne.s32.totalorder %s82, %s83
      %p94 = scmp.eq.s32.totalorder %s24, 0
      %p95 = por %p93, %p94
      %p96 = scmp.ne.s32.totalorder %s82, %s83
      %p97 = scmp.eq.s32.totalorder %s25, 1
      %p98 = por %p96, %p97
      %p100 = scmp.ne.s32.totalorder %s83, %s99
      %p101 = scmp.eq.s32.totalorder %s25, 0
      %p102 = por %p100, %p101
      %s103 = ssub.s32 %s26, %s38
      %p104 = scmp.eq.s32.totalorder %s103, 0
      %s106 = sadd.s32 %s105, 1
      %s107 = scalar_select %p104, %s105, %s106
      %p110 = pneg %p104
      %p111 = scmp.eq.s32.totalorder %s19, 1
      %p112 = por %p110, %p111
      %p113 = scmp.ne.s32.totalorder %s105, %s108
      %p114 = scmp.eq.s32.totalorder %s19, 0
      %p115 = por %p113, %p114
      %p116 = scmp.ne.s32.totalorder %s105, %s108
      %p117 = scmp.eq.s32.totalorder %s24, 1
      %p118 = por %p116, %p117
      %p119 = scmp.ne.s32.totalorder %s108, %s109
      %p120 = scmp.eq.s32.totalorder %s24, 0
      %p121 = por %p119, %p120
      %p122 = scmp.ne.s32.totalorder %s108, %s109
      %p123 = scmp.eq.s32.totalorder %s25, 1
      %p124 = por %p122, %p123
      %p126 = scmp.ne.s32.totalorder %s109, %s125
      %p127 = scmp.eq.s32.totalorder %s25, 0
      %p128 = por %p126, %p127
      %p129 = scmp.le.s32.totalorder 1, %s19
      %p130 = scmp.lt.s32.totalorder %s19, 3
      %p131 = pnand %p129, %p130
      %p132 = pneg %p131
      // Predicated region
      $region9: #{tpu_custom_call.1} parent=5 // pred_check
        _
      $region10: #{tpu_custom_call.1} parent=5 // pred_check_branch
        %134 = sbr.rel (%p131) target = $region12
      $region11: #{tpu_custom_call.1} parent=5 // pred_region
        %s135 = ssub.s32 %s19, 1
      $region12: #{tpu_custom_call.1} parent=5 // pred_fallthru
        _
      %p136 = scmp.lt.s32.totalorder %s19, 2
      // Predicated region
      $region13: #{tpu_custom_call.1} parent=5 // pred_check
        %p137 = pneg %p136
      $region14: #{tpu_custom_call.1} parent=5 // pred_check_branch
        %139 = sbr.rel (%p137) target = $region16
      $region15: #{tpu_custom_call.1} parent=5 // pred_region
        // Predicated region
        $region17: #{tpu_custom_call.1} parent=15 // pred_check
          %p140 = pneg %p57
        $region18: #{tpu_custom_call.1} parent=15 // pred_check_branch
          %142 = sbr.rel (%p140) target = $region20
        $region19: #{tpu_custom_call.1} parent=15 // pred_region
          %s143 = sand.u32 %s47, 1
          %s144 = scalar_lea.sflag [#allocation6], %s143
          %s145 = sand.u32 %s47, 1
          %s146 = smul.addr %s145, 8
          %s147 = scalar_lea.vmem [#allocation5], %s146
          %s148 = sadd.s32 %s26, %s27
          %p149 = scmp.lt.s32.totalorder %s148, 0
          %s150 = scalar_select %p149, %s148, 0
          %s152 = ssub.s32 128, 128
          %153 = vsyncadd %s144, %s152
          %s154 = smul.addr %s150, 128
          %s155 = scalar_lea.hbm %s1, %s154
          %s157 = sshll.u32 %s147, 4
          %s158 = int_to_ptr.vmem [resolvable:$true] %s157
          %160 = dma.hbm_to_vmem [thread:$0]  %s155, 128, %s158, %s144
        $region20: #{tpu_custom_call.1} parent=15 // pred_fallthru
          _
        // Predicated region
        $region21: #{tpu_custom_call.1} parent=15 // pred_check
          %p161 = pneg %p89
        $region22: #{tpu_custom_call.1} parent=15 // pred_check_branch
          %163 = sbr.rel (%p161) target = $region24
        $region23: #{tpu_custom_call.1} parent=15 // pred_region
          %s164 = sand.u32 %s79, 1
          %s165 = scalar_lea.sflag [#allocation9], %s164
          %s166 = sand.u32 %s79, 1
          %s167 = smul.addr %s166, 8
          %s168 = scalar_lea.vmem [#allocation8], %s167
          %s169 = sadd.s32 %s26, %s27
          %p170 = scmp.lt.s32.totalorder %s169, 0
          %s171 = scalar_select %p170, %s169, 0
          %s173 = ssub.s32 128, 128
          %174 = vsyncadd %s165, %s173
          %s175 = smul.addr %s171, 128
          %s176 = scalar_lea.hbm %s2, %s175
          %s178 = sshll.u32 %s168, 4
          %s179 = int_to_ptr.vmem [resolvable:$true] %s178
          %181 = dma.hbm_to_vmem [thread:$0]  %s176, 128, %s179, %s165
        $region24: #{tpu_custom_call.1} parent=15 // pred_fallthru
          _
      $region16: #{tpu_custom_call.1} parent=5 // pred_fallthru
        _
      %p182 = scmp.le.s32.totalorder 1, %s19
      %p183 = scmp.lt.s32.totalorder %s19, 3
      %p184 = pnand %p182, %p183
      %p185 = pneg %p184
      // Predicated region
      $region25: #{tpu_custom_call.1} parent=5 // pred_check
        _
      $region26: #{tpu_custom_call.1} parent=5 // pred_check_branch
        %187 = sbr.rel (%p184) target = $region28
      $region27: #{tpu_custom_call.1} parent=5 // pred_region
        %s188 = ssub.s32 %s19, 1
        %s189 = sand.u32 %s50, 1
        %s190 = scalar_lea.sflag [#allocation6], %s189
        %s191 = sand.u32 %s50, 1
        %s192 = smul.addr %s191, 8
        %s193 = scalar_lea.vmem [#allocation5], %s192
        // Predicated region
        $region29: #{tpu_custom_call.1} parent=27 // pred_check
          %p194 = pneg %p63
        $region30: #{tpu_custom_call.1} parent=27 // pred_check_branch
          %196 = sbr.rel (%p194) target = $region32
        $region31: #{tpu_custom_call.1} parent=27 // pred_region
          %197 = dma.done %s190, 128
        $region32: #{tpu_custom_call.1} parent=27 // pred_fallthru
          _
        %s198 = sand.u32 %s82, 1
        %s199 = scalar_lea.sflag [#allocation9], %s198
        %s200 = sand.u32 %s82, 1
        %s201 = smul.addr %s200, 8
        %s202 = scalar_lea.vmem [#allocation8], %s201
        // Predicated region
        $region33: #{tpu_custom_call.1} parent=27 // pred_check
          %p203 = pneg %p95
        $region34: #{tpu_custom_call.1} parent=27 // pred_check_branch
          %205 = sbr.rel (%p203) target = $region36
        $region35: #{tpu_custom_call.1} parent=27 // pred_region
          %206 = dma.done %s199, 128
        $region36: #{tpu_custom_call.1} parent=27 // pred_fallthru
          _
        %s207 = sand.u32 %s50, 1
        %s208 = scalar_lea.sflag [#allocation6], %s207
        %s209 = sand.u32 %s50, 1
        %s210 = smul.addr %s209, 8
        %s211 = scalar_lea.vmem [#allocation5], %s210
        %p212 = pneg %p63
        %p213 = pneg %p60
        %s214 = sand.u32 %s82, 1
        %s215 = scalar_lea.sflag [#allocation9], %s214
        %s216 = sand.u32 %s82, 1
        %s217 = smul.addr %s216, 8
        %s218 = scalar_lea.vmem [#allocation8], %s217
        %p219 = pneg %p95
        %p220 = pneg %p92
        %p221 = pneg %p121
        %p222 = pneg %p118
        %s223 = sand.u32 %s108, 1
        %s224 = scalar_lea.sflag [#allocation7], %s223
        %s225 = sand.u32 %s108, 1
        %s226 = smul.addr %s225, 8
        %s227 = scalar_lea.vmem [#allocation10], %s226
        %s228 = sadd.s32 %s28, %s29
        %p229 = scmp.lt.s32.totalorder %s228, 0
        %s230 = scalar_select %p229, %s228, 0
        %s231 = sadd.s32 %s28, %s29
        %p232 = scmp.lt.s32.totalorder %s231, 0
        %s233 = scalar_select %p232, %s231, 0
        %p234 = scmp.eq.s32.totalorder %s29, 0
        // Predicated region
        $region37: #{tpu_custom_call.1} parent=27 // pred_check
          %p235 = pneg %p234
        $region38: #{tpu_custom_call.1} parent=27 // pred_check_branch
          %237 = sbr.rel (%p235) target = $region40
        $region39: #{tpu_custom_call.1} parent=27 // pred_region
          %238 = vst [vmem:[#allocation2] sm:$0x1] 0.0
        $region40: #{tpu_custom_call.1} parent=27 // pred_fallthru
          _
        %s239 = sadd.s32 %s28, %s29
        %s240 = smul.u32 %s239, 1024
        %v241 = vlaneseq
        %v242 = vshrl.u32 %v241, 7
        %v243 = vlaneseq
        %v244 = vand.u32 %v243, 127
        %v245 = vmul.u32 %v242, 128
        %v246 = vstv %s240
        %v247 = vadd.s32 %v246, %v245
        %v248 = vadd.s32 %v247, %v244
        %s249 = sld [smem:[#allocation4]]
        %v250 = vstv %s249
        %vm251 = vcmp.lt.s32.totalorder %v248, %v250
        %v252 = vld [vmem:[%s193] sm:$0xff]
        %v253 = vld [vmem:[%s202] sm:$0xff]
        %v254 = vxor.u32 %v252, 2147483648
        %v255 = vmul.f32 %v254, 1.442695
        %v256 = vpow.pop %v255
        %v257 = vadd.f32 %v256, 1.0
        %v258 = vrcp.pop %v257
        %v259 = vmul.f32 1.0, %v258
        %v260 = vmul.f32 %v259, %v253
        %v261 = vsel %vm251, %v260, 0.0
        %v262 = vld [vmem:[#allocation2] sm:$0x1]
        %v263 = vrot.slane %v261, 4
        %v264 = vadd.f32 %v261, %v263
        %v265 = vrot.slane %v264, 2
        %v266 = vadd.f32 %v264, %v265
        %v267 = vrot.slane %v266, 1
        %v268 = vadd.f32 %v266, %v267
        %v269 = vadd.f32 %v262, %v268
        %270 = vst [vmem:[#allocation2] sm:$0x1] %v269
        // Predicated region
        $region41: #{tpu_custom_call.1} parent=27 // pred_check
          %p271 = pneg %p234
        $region42: #{tpu_custom_call.1} parent=27 // pred_check_branch
          %273 = sbr.rel (%p271) target = $region44
        $region43: #{tpu_custom_call.1} parent=27 // pred_region
          %v274 = vld [vmem:[#allocation2] sm:$0x1]
          %v276 = vlaneseq
          %v277 = vshrl.u32 %v276, 7
          %v278 = vsub.s32 0, %v277
          %v279 = vrot.slane %v274, %v278
          %281 = vst [vmem:[%s227] sm:$0xff] %v279
        $region44: #{tpu_custom_call.1} parent=27 // pred_fallthru
          _
        %s282 = sand.u32 %s108, 1
        %s283 = scalar_lea.sflag [#allocation7], %s282
        %s284 = sand.u32 %s108, 1
        %s285 = smul.addr %s284, 8
        %s286 = scalar_lea.vmem [#allocation10], %s285
        // Predicated region
        $region45: #{tpu_custom_call.1} parent=27 // pred_check
          %p287 = pneg %p118
        $region46: #{tpu_custom_call.1} parent=27 // pred_check_branch
          %289 = sbr.rel (%p287) target = $region48
        $region47: #{tpu_custom_call.1} parent=27 // pred_region
          %s291 = ssub.s32 128, 128
          %292 = vsyncadd %s283, %s291
          %s293 = smul.addr %s28, 128
          %s294 = scalar_lea.hbm %s3, %s293
          %s296 = sshll.u32 %s286, 4
          %s297 = int_to_ptr.vmem [resolvable:$true] %s296
          %299 = dma.vmem_to_hbm [thread:$0]  %s297, 128, %s294, %s283
        $region48: #{tpu_custom_call.1} parent=27 // pred_fallthru
          _
      $region28: #{tpu_custom_call.1} parent=5 // pred_fallthru
        _
      %p300 = scmp.le.s32.totalorder 2, %s19
      // Predicated region
      $region49: #{tpu_custom_call.1} parent=5 // pred_check
        %p301 = pneg %p300
      $region50: #{tpu_custom_call.1} parent=5 // pred_check_branch
        %303 = sbr.rel (%p301) target = $region52
      $region51: #{tpu_custom_call.1} parent=5 // pred_region
        %s304 = ssub.s32 %s19, 2
        // Predicated region
        $region53: #{tpu_custom_call.1} parent=51 // pred_check
          %p305 = pneg %p124
        $region54: #{tpu_custom_call.1} parent=51 // pred_check_branch
          %307 = sbr.rel (%p305) target = $region56
        $region55: #{tpu_custom_call.1} parent=51 // pred_region
          %s308 = sand.u32 %s109, 1
          %s309 = scalar_lea.sflag [#allocation7], %s308
          %s310 = sand.u32 %s109, 1
          %s311 = smul.addr %s310, 8
          %s312 = scalar_lea.vmem [#allocation10], %s311
          %313 = dma.done %s309, 128
        $region56: #{tpu_custom_call.1} parent=51 // pred_fallthru
          _
      $region52: #{tpu_custom_call.1} parent=5 // pred_fallthru
        _
    $region6: #{tpu_custom_call.1} parent=1 // loop_footer
      %s23 = sadd.s32 1, %s19
    $region7: #{tpu_custom_call.1} parent=1 // loop_footer_branch
      %18 = sbr.rel target = $region3
    $region8: #{tpu_custom_call.1} parent=1 // loop_exit
      _
    %314 = vsyncpa [#allocation6], 1
    %s315 = scalar_lea.sflag [#allocation6], 1
    %316 = vsyncpa %s315, 1
    %317 = vsyncpa [#allocation9], 1
    %s318 = scalar_lea.sflag [#allocation9], 1
    %319 = vsyncpa %s318, 1
    %320 = vsyncpa [#allocation7], 1
    %s321 = scalar_lea.sflag [#allocation7], 1
    %322 = vsyncpa %s321, 1

</llo_original>
